<compile_context>
chip_gen: v7x
topology: tpu7x:2x2x1
jax: 0.10.0
libtpu: 0.0.40
codegen_flags: <defaults>
</compile_context>

<pallas_src>
import functools

import jax
import jax.numpy as jnp
import numpy as np
from jax import lax
from jax.experimental import pallas as pl
from jax.experimental.pallas import tpu as pltpu

_SUB = 8      # f32 sublanes per vreg
_LANE = 128   # lanes per vreg


# ---------------------------------------------------------------------------
# Cox partial-likelihood loss kernel
# ---------------------------------------------------------------------------
def _cox_loss_kernel(x_ref, invb_ref, out_ref, *, sub, lanes):
    # x_ref: (2, sub, lanes) f32 in VMEM.  Channel 0 = risk scores, channel 1 =
    #        status, already sorted by descending event time and padded
    #        (scores -> -1e30, status -> 0).  Flat sorted index = row*lanes + lane.
    # invb_ref: (1, 1) f32 in SMEM holding 1/batch.
    # out_ref:  (1, 1) f32 in SMEM.
    scores = x_ref[0]                                    # (sub, lanes)
    status = x_ref[1]

    # Numerical stabilization (the -1e30 padding never wins the max).
    m = jnp.max(scores)
    c = scores - m
    e = jnp.exp(c)                                       # EUP; exp(pad) == 0

    # Inclusive prefix sum along lanes on the MXU:
    #   row_inc[s, i] = sum_{j<=i} e[s, j]  =  (e @ U)[s, i],  U[j, i] = (j <= i).
    j = lax.broadcasted_iota(jnp.int32, (lanes, lanes), 0)
    i = lax.broadcasted_iota(jnp.int32, (lanes, lanes), 1)
    upper = jnp.where(j <= i, 1.0, 0.0).astype(jnp.float32)
    row_inc = jnp.dot(e, upper, preferred_element_type=jnp.float32)   # (sub, lanes)

    # Carry of all previous sublane rows, also on the MXU:
    #   carry[s, :] = sum_{t<s} rowsum[t]  =  (L @ row_tot)[s, :],  L[s, t] = (t < s).
    row_tot = jnp.broadcast_to(jnp.sum(e, axis=1, keepdims=True), (sub, lanes))
    s0 = lax.broadcasted_iota(jnp.int32, (sub, sub), 0)
    s1 = lax.broadcasted_iota(jnp.int32, (sub, sub), 1)
    lower = jnp.where(s1 < s0, 1.0, 0.0).astype(jnp.float32)
    carry = jnp.dot(lower, row_tot, preferred_element_type=jnp.float32)  # (sub, lanes)

    csum = row_inc + carry                               # flat row-major cumsum of e

    # Padded entries have status == 0 (and finite c), so they contribute 0.
    loss = -(c - jnp.log(csum + 1e-5)) * status
    out_ref[0, 0] = jnp.sum(loss) * invb_ref[0, 0]       # mean over the true batch


def cox_loss_pallas(cox_scores, times, status):
    """Cox partial negative log-likelihood; matches the PyTorch cox_loss."""
    cox_scores = cox_scores.astype(jnp.float32)
    times = times.astype(jnp.float32)
    status = status.astype(jnp.float32)
    batch = cox_scores.shape[0]

    # TODO(synk): the data-dependent argsort by event time has no Pallas
    # equivalent, and an in-kernel gather across a 1024-wide sorted index has
    # no robust Mosaic lowering (lane gathers are per-vreg); the sort + one
    # fused stack/gather stay in XLA glue.
    order = jnp.argsort(-times)                          # descending event time
    packed = jnp.stack([cox_scores, status], axis=0)[:, order]        # (2, B)

    # Pad the batch up to a multiple of 8*128 so the kernel sees full (8, 128)
    # f32 tiles.  Pads land at the end of the flat order: padded scores ->
    # -1e30 (exp == 0, never the max), status -> 0.
    padded = pl.cdiv(batch, _SUB * _LANE) * (_SUB * _LANE)
    pad = padded - batch
    if pad:
        tail = jnp.concatenate(
            [jnp.full((1, pad), -1e30, jnp.float32),
             jnp.zeros((1, pad), jnp.float32)], axis=0)
        packed = jnp.concatenate([packed, tail], axis=1)
    lanes = padded // _SUB
    x = packed.reshape(2, _SUB, lanes)                   # flat index = row*lanes + lane

    # 1/batch as a runtime SMEM scalar: batch changes (same padded shape) do
    # not force a kernel recompile.
    inv_b = jnp.full((1, 1), 1.0 / batch, jnp.float32)

    kernel = functools.partial(_cox_loss_kernel, sub=_SUB, lanes=lanes)
    out = pl.pallas_call(
        kernel,
        out_shape=jax.ShapeDtypeStruct((1, 1), jnp.float32),
        in_specs=[pl.BlockSpec(memory_space=pltpu.VMEM),
                  pl.BlockSpec(memory_space=pltpu.SMEM)],
        out_specs=pl.BlockSpec(memory_space=pltpu.SMEM),
    )(x, inv_b)
    # TODO(synk): for very large B, switch to a grid over batch chunks with an
    # online log-cumsum-exp carry (flash-style) so the data streams from HBM.
    return out[0, 0]


def cox_loss_ref(cox_scores, times, status):
    """Pure-JAX reference mirroring the PyTorch cox_loss."""
    order = jnp.argsort(-times)
    s = cox_scores[order]
    st = status[order]
    s = s - jnp.max(s)
    e = jnp.exp(s)
    loss = s - jnp.log(jnp.cumsum(e) + 1e-5)
    return jnp.mean(-loss * st)


# ---------------------------------------------------------------------------
# AggregationModel head kernel: features.mean(dim=1) -> fc
# ---------------------------------------------------------------------------
def _agg_head_kernel(feat_ref, w_ref, b_ref, out_ref, acc_ref, *, inv_bag):
    # feat_ref: (1, bag_tile, D) block; w_ref: (D, O); b_ref: (1, O);
    # out_ref: (1, 1, O) block; acc_ref: (1, D) f32 VMEM scratch.
    t = pl.program_id(1)

    @pl.when(t == 0)
    def _init():
        acc_ref[...] = jnp.zeros_like(acc_ref)

    # Accumulate the bag sum for this tile (zero-padded tiles add nothing).
    acc_ref[...] += jnp.sum(feat_ref[0], axis=0, keepdims=True)       # (1, D)

    @pl.when(t == pl.num_programs(1) - 1)
    def _finalize():
        pooled = acc_ref[...] * inv_bag                               # mean over bag
        out = jnp.dot(pooled, w_ref[...],
                      preferred_element_type=jnp.float32) + b_ref[...]  # (1, O), MXU
        out_ref[0] = out


def aggregation_head_pallas(features, fc_weight, fc_bias, *, bag_tile=512):
    """AggregationModel forward head: fc(features.mean(axis=1)).

    `features` is the aggregator output (batch, bag, aggregator_dim).
    TODO(synk): resnet.forward_extract and the attention aggregator are external
    nn.Modules not defined in the spec, so they are not translated here.
    """
    features = features.astype(jnp.float32)
    w_t = fc_weight.astype(jnp.float32).T                # (D, out_features)
    b = fc_bias.astype(jnp.float32).reshape(1, -1)       # (1, out_features)
    batch, bag, d = features.shape
    out_features = w_t.shape[1]

    # Tile the bag dimension so large bags stream through VMEM (double-buffered
    # per tile) instead of whole-array residency.  Zero-pad the bag to a
    # multiple of the tile; pads contribute 0 to the sum and the mean divides
    # by the true bag size.
    tile = min(bag_tile, bag)
    if tile < bag:                                       # tiled path: multiple of 8
        tile = max(8, (tile // 8) * 8)
    padded_bag = pl.cdiv(bag, tile) * tile
    if padded_bag != bag:
        features = jnp.pad(features, ((0, 0), (0, padded_bag - bag), (0, 0)))
    n_tiles = padded_bag // tile

    kernel = functools.partial(_agg_head_kernel, inv_bag=1.0 / bag)
    out = pl.pallas_call(
        kernel,
        out_shape=jax.ShapeDtypeStruct((batch, 1, out_features), jnp.float32),
        grid_spec=pltpu.PrefetchScalarGridSpec(
            num_scalar_prefetch=0,
            grid=(batch, n_tiles),
            in_specs=[
                pl.BlockSpec((1, tile, d), lambda bi, ti: (bi, ti, 0)),
                pl.BlockSpec((d, out_features), lambda bi, ti: (0, 0)),
                pl.BlockSpec((1, out_features), lambda bi, ti: (0, 0)),
            ],
            out_specs=pl.BlockSpec((1, 1, out_features), lambda bi, ti: (bi, 0, 0)),
            scratch_shapes=[pltpu.VMEM((1, d), jnp.float32)],
        ),
        compiler_params=pltpu.CompilerParams(
            dimension_semantics=("parallel", "arbitrary")),
    )(features, w_t, b)
    return out.reshape(batch, out_features)


def aggregation_head_ref(features, fc_weight, fc_bias):
    pooled = features.mean(axis=1)
    return jnp.sum(pooled[:, None, :] * fc_weight[None, :, :], axis=-1) + fc_bias[None, :]


# ---------------------------------------------------------------------------
if __name__ == "__main__":
    key = jax.random.PRNGKey(0)
    k = jax.random.split(key, 8)

    # AggregationModel head: batch=2, bag=4, aggregator_dim=32, out_features=1.
    batch, bag, agg_dim, out_feats = 2, 4, 32, 1
    features = jax.random.normal(k[0], (batch, bag, agg_dim), dtype=jnp.float32)
    fc_w = jax.random.normal(k[1], (out_feats, agg_dim), dtype=jnp.float32) * 0.1
    fc_b = jax.random.normal(k[2], (out_feats,), dtype=jnp.float32)
    head_out = jax.block_until_ready(aggregation_head_pallas(features, fc_w, fc_b))
    head_ref = aggregation_head_ref(features, fc_w, fc_b)
    assert np.allclose(head_out, head_ref, rtol=1e-4, atol=1e-4), (head_out, head_ref)

    # Larger bag with explicit tiling: exercises the (batch, bag-tile) grid,
    # the accumulator init/finalize and the zero-pad path.
    features2 = jax.random.normal(k[3], (batch, 40, agg_dim), dtype=jnp.float32)
    head_out2 = jax.block_until_ready(
        aggregation_head_pallas(features2, fc_w, fc_b, bag_tile=16))
    head_ref2 = aggregation_head_ref(features2, fc_w, fc_b)
    assert np.allclose(head_out2, head_ref2, rtol=1e-4, atol=1e-4), (head_out2, head_ref2)

    # Cox loss on the model's scalar risk scores: small batch and a batch that
    # spans several sublane rows (exercises the cross-sublane carry matmul).
    for i, B in enumerate((8, 300)):
        kk = jax.random.split(k[4 + i], 3)
        scores = jax.random.normal(kk[0], (B,), dtype=jnp.float32)
        times = jax.random.uniform(kk[1], (B,), dtype=jnp.float32, minval=0.1, maxval=10.0)
        status = (jax.random.uniform(kk[2], (B,)) > 0.3).astype(jnp.float32)
        out = jax.block_until_ready(cox_loss_pallas(scores, times, status))
        ref = cox_loss_ref(scores, times, status)
        assert np.allclose(out, ref, rtol=1e-4, atol=1e-4), (B, out, ref)

    print("KERNEL_OK")
</pallas_src>

<mosaic_0001>
module attributes {stable_mosaic.version = 11 : i64} {
  func.func @_agg_head_kernel(%arg0: i32, %arg1: i32, %arg2: memref<1x4x32xf32, #tpu.memory_space<vmem>>, %arg3: memref<32x1xf32, #tpu.memory_space<vmem>>, %arg4: memref<1x1xf32, #tpu.memory_space<vmem>>, %arg5: memref<1x1x1xf32, #tpu.memory_space<vmem>>, %arg6: memref<1x32xf32, #tpu.memory_space<vmem>>) attributes {dimension_semantics = [#tpu.dimension_semantics<parallel>, #tpu.dimension_semantics<arbitrary>], iteration_bounds = array<i64: 2, 1>, scalar_prefetch = 0 : i64, scratch_operands = 1 : i64, tpu.core_type = #tpu.core_type<tc>, window_params = [{transform_indices = @transform_0, window_bounds = array<i64: 1, 4, 32>}, {pipeline_mode = #tpu.pipeline_mode<synchronous>, transform_indices = @transform_1, window_bounds = array<i64: 32, 1>}, {pipeline_mode = #tpu.pipeline_mode<synchronous>, transform_indices = @transform_2, window_bounds = array<i64: 1, 1>}, {transform_indices = @transform_3, window_bounds = array<i64: 1, 1, 1>}]} {
    %c0_i32 = arith.constant 0 : i32
    %0 = arith.cmpi eq, %arg1, %c0_i32 : i32
    %1 = arith.extui %0 : i1 to i32
    %c0_i32_0 = arith.constant 0 : i32
    %2 = arith.cmpi ne, %1, %c0_i32_0 : i32
    scf.if %2 {
      %cst_9 = arith.constant 0.000000e+00 : f32
      %13 = vector.broadcast %cst_9 : f32 to vector<1x32xf32>
      %c0_10 = arith.constant 0 : index
      %c0_11 = arith.constant 0 : index
      %14 = vector.load %arg6[%c0_10, %c0_11] : memref<1x32xf32, #tpu.memory_space<vmem>>, vector<1x32xf32>
      tpu.vector_store %arg6[%c0_10, %c0_11], %13 {strides = array<i32>} : memref<1x32xf32, #tpu.memory_space<vmem>>, vector<1x32xf32>,
    } else {
    }
    %c0 = arith.constant 0 : index
    %c0_1 = arith.constant 0 : index
    %3 = vector.load %arg6[%c0, %c0_1] : memref<1x32xf32, #tpu.memory_space<vmem>>, vector<1x32xf32>
    %c0_2 = arith.constant 0 : index
    %c0_3 = arith.constant 0 : index
    %c0_4 = arith.constant 0 : index
    %4 = vector.load %arg2[%c0_2, %c0_3, %c0_4] : memref<1x4x32xf32, #tpu.memory_space<vmem>>, vector<1x4x32xf32>
    %5 = vector.shape_cast %4 : vector<1x4x32xf32> to vector<4x32xf32>
    %cst = arith.constant dense<0.000000e+00> : vector<32xf32>
    %6 = vector.multi_reduction <add>, %5, %cst [0] : vector<4x32xf32> to vector<32xf32>
    %7 = vector.shape_cast %6 : vector<32xf32> to vector<1x32xf32>
    %8 = arith.addf %3, %7 : vector<1x32xf32>
    %c0_5 = arith.constant 0 : index
    %c0_6 = arith.constant 0 : index
    %9 = vector.load %arg6[%c0_5, %c0_6] : memref<1x32xf32, #tpu.memory_space<vmem>>, vector<1x32xf32>
    tpu.vector_store %arg6[%c0_5, %c0_6], %8 {strides = array<i32>} : memref<1x32xf32, #tpu.memory_space<vmem>>, vector<1x32xf32>,
    %c0_i32_7 = arith.constant 0 : i32
    %10 = arith.cmpi eq, %arg1, %c0_i32_7 : i32
    %11 = arith.extui %10 : i1 to i32
    %c0_i32_8 = arith.constant 0 : i32
    %12 = arith.cmpi ne, %11, %c0_i32_8 : i32
    scf.if %12 {
      %c0_9 = arith.constant 0 : index
      %c0_10 = arith.constant 0 : index
      %13 = vector.load %arg6[%c0_9, %c0_10] : memref<1x32xf32, #tpu.memory_space<vmem>>, vector<1x32xf32>
      %cst_11 = arith.constant 2.500000e-01 : f32
      %14 = vector.broadcast %cst_11 : f32 to vector<1x32xf32>
      %15 = arith.mulf %13, %14 : vector<1x32xf32>
      %c0_12 = arith.constant 0 : index
      %c0_13 = arith.constant 0 : index
      %16 = vector.load %arg3[%c0_12, %c0_13] : memref<32x1xf32, #tpu.memory_space<vmem>>, vector<32x1xf32>
      %cst_14 = arith.constant dense<0.000000e+00> : vector<1x1xf32>
      %17 = tpu.matmul %15, %16, %cst_14 {dimension_numbers = #tpu.dot_dimension_numbers<[1], [0], [0], [1], [0, 0, 1, 1], [], []>} : vector<1x32xf32>, vector<32x1xf32>, vector<1x1xf32> -> vector<1x1xf32>
      %c0_15 = arith.constant 0 : index
      %c0_16 = arith.constant 0 : index
      %18 = vector.load %arg4[%c0_15, %c0_16] : memref<1x1xf32, #tpu.memory_space<vmem>>, vector<1x1xf32>
      %19 = arith.addf %17, %18 : vector<1x1xf32>
      %c0_17 = arith.constant 0 : index
      %c0_18 = arith.constant 0 : index
      %c0_19 = arith.constant 0 : index
      %20 = vector.load %arg5[%c0_17, %c0_18, %c0_19] : memref<1x1x1xf32, #tpu.memory_space<vmem>>, vector<1x1x1xf32>
      %21 = vector.shape_cast %20 : vector<1x1x1xf32> to vector<1x1xf32>
      %22 = vector.shape_cast %19 : vector<1x1xf32> to vector<1x1x1xf32>
      tpu.vector_store %arg5[%c0_17, %c0_18, %c0_19], %22 {strides = array<i32>} : memref<1x1x1xf32, #tpu.memory_space<vmem>>, vector<1x1x1xf32>,
    } else {
    }
    return
  }
  func.func @transform_0(%arg0: i32, %arg1: i32) -> (i32, i32, i32) {
    %c0_i32 = arith.constant 0 : i32
    %c0_i32_0 = arith.constant 0 : i32
    return %arg0, %arg1, %c0_i32 : i32, i32, i32
  }
  func.func @transform_1(%arg0: i32, %arg1: i32) -> (i32, i32) {
    %c0_i32 = arith.constant 0 : i32
    %c0_i32_0 = arith.constant 0 : i32
    %c0_i32_1 = arith.constant 0 : i32
    return %c0_i32, %c0_i32_0 : i32, i32
  }
  func.func @transform_2(%arg0: i32, %arg1: i32) -> (i32, i32) {
    %c0_i32 = arith.constant 0 : i32
    %c0_i32_0 = arith.constant 0 : i32
    %c0_i32_1 = arith.constant 0 : i32
    return %c0_i32, %c0_i32_0 : i32, i32
  }
  func.func @transform_3(%arg0: i32, %arg1: i32) -> (i32, i32, i32) {
    %c0_i32 = arith.constant 0 : i32
    %c0_i32_0 = arith.constant 0 : i32
    %c0_i32_1 = arith.constant 0 : i32
    return %arg0, %c0_i32, %c0_i32_0 : i32, i32, i32
  }
}

</mosaic_0001>

<llo_original>
// kernel: tpu_custom_call.1
$region0: #{tpu_custom_call.1}
  #allocation0 [shape = 'u32[]', space=smem, size = 0x4, offset = 0x4, fixed_abs, tag = 'smem constant byte address 0x4 - core index']
  #allocation1 [shape = 'u32[144,128]{1,0:T(1,128)}', space=vmem, size = 0x12000, scoped, tag = 'internal scratch']
  #allocation2 [shape = 'f32[1,32]{1,0:T(1,128)}', space=vmem, size = 0x200, scoped, tag = 'scratch operand']
  #allocation3 [shape = 'f32[1,1]{1,0:T(1,128)S(1)}', space=vmem, size = 0x200, scoped, tag = 'scoped memory for tpu_custom_call.1']
  %s0 = inlined_call_operand.vmem [shape: f32[2,4,32], index: 0, kind: input, shape index: {}]
  %s1 = inlined_call_operand.vmem [shape: f32[32,1], index: 1, kind: input, shape index: {}]
  %s2 = inlined_call_operand.<no memory space> [shape: f32[1,1], index: 2, kind: input, shape index: {}]
  %s3 = inlined_call_operand.vmem [shape: f32[2,1,1], index: 3, kind: output, shape index: {}]
  %s4 = sld [smem:[#allocation0]]
  $region53: #{tpu_custom_call.1} parent=0
    _
  %s6 = ssub.s32 1, %s4
  %s7 = scalar_select 0, %s6, %s4
  %v8 = vstv %s2
  %9 = vst [vmem:[#allocation3] sm:$0x1] %v8
  loop: start=0, step=1, limit=4
  $region2: #{tpu_custom_call.1} parent=0 // loop_pre_header
    _
  $region3: #{tpu_custom_call.1} parent=0 // loop_header
    %s11 = sphi 0, %s15
    %p12 = scmp.ge.s32.totalorder %s11, 4
    %s18 = sphi 0, %s30
    %s19 = sphi 0, %s26
    %s20 = sphi 0, %s18
    %s21 = sphi 0, %s19
    %s22 = sphi 0, %s20
    %s23 = sphi 0, %s21
    %s35 = sphi 0, %s37
    %s38 = sphi 0, %s35
    %s39 = sphi 0, %s38
    %s55 = sphi 0, %s39
    %s59 = sphi 0, %s59
    %s61 = sphi 0, %s59
    %s62 = sphi 0, %s61
    %s76 = sphi 0, %s62
    %s80 = sphi 0, %s80
    %s82 = sphi 0, %s80
    %s83 = sphi 0, %s82
    %s97 = sphi 0, %s83
    %s103 = sphi 0, %s105
    %s106 = sphi 0, %s103
    %s107 = sphi 0, %s106
    %s123 = sphi 0, %s107
  $region4: #{tpu_custom_call.1} parent=0 // loop_header_branch
    %14 = sbr.rel (%p12) target = $region8
  $region5: #{tpu_custom_call.1} parent=0 // loop_body
    %s16 = ssub.s32 %s11, 1
    %s17 = ssub.s32 %s11, 2
    %s24 = sadd.s32 1, %s19
    %p25 = scmp.ge.s32.totalorder %s24, 1
    %s26 = scalar_select %p25, 0, %s24
    %s27 = sadd.s32 1, %s18
    %s28 = scalar_select %p25, %s27, %s18
    %p29 = scmp.ge.s32.totalorder %s28, 2
    %s30 = scalar_select %p29, 0, %s28
    %s31 = ssub.s32 %s18, %s30
    %s32 = ssub.s32 %s19, %s26
    %s33 = sor.u32 %s31, %s32
    %p34 = scmp.eq.s32.totalorder %s33, 0
    %s36 = sadd.s32 %s35, 1
    %s37 = scalar_select %p34, %s35, %s36
    %p40 = pneg %p34
    %p41 = scmp.eq.s32.totalorder %s11, 1
    %p42 = por %p40, %p41
    %p43 = scmp.ne.s32.totalorder %s35, %s38
    %p44 = scmp.eq.s32.totalorder %s11, 0
    %p45 = por %p43, %p44
    %p46 = scmp.ne.s32.totalorder %s35, %s38
    %p47 = scmp.eq.s32.totalorder %s16, 1
    %p48 = por %p46, %p47
    %p49 = scmp.ne.s32.totalorder %s38, %s39
    %p50 = scmp.eq.s32.totalorder %s16, 0
    %p51 = por %p49, %p50
    %p52 = scmp.ne.s32.totalorder %s38, %s39
    %p53 = scmp.eq.s32.totalorder %s17, 1
    %p54 = por %p52, %p53
    %p56 = scmp.ne.s32.totalorder %s39, %s55
    %p57 = scmp.eq.s32.totalorder %s17, 0
    %p58 = por %p56, %p57
    %s60 = sadd.s32 %s59, 1
    %p63 = scmp.eq.s32.totalorder %s11, 1
    %p64 = scmp.ne.s32.totalorder %s59, %s61
    %p65 = scmp.eq.s32.totalorder %s11, 0
    %p66 = por %p64, %p65
    %p67 = scmp.ne.s32.totalorder %s59, %s61
    %p68 = scmp.eq.s32.totalorder %s16, 1
    %p69 = por %p67, %p68
    %p70 = scmp.ne.s32.totalorder %s61, %s62
    %p71 = scmp.eq.s32.totalorder %s16, 0
    %p72 = por %p70, %p71
    %p73 = scmp.ne.s32.totalorder %s61, %s62
    %p74 = scmp.eq.s32.totalorder %s17, 1
    %p75 = por %p73, %p74
    %p77 = scmp.ne.s32.totalorder %s62, %s76
    %p78 = scmp.eq.s32.totalorder %s17, 0
    %p79 = por %p77, %p78
    %s81 = sadd.s32 %s80, 1
    %p84 = scmp.eq.s32.totalorder %s11, 1
    %p85 = scmp.ne.s32.totalorder %s80, %s82
    %p86 = scmp.eq.s32.totalorder %s11, 0
    %p87 = por %p85, %p86
    %p88 = scmp.ne.s32.totalorder %s80, %s82
    %p89 = scmp.eq.s32.totalorder %s16, 1
    %p90 = por %p88, %p89
    %p91 = scmp.ne.s32.totalorder %s82, %s83
    %p92 = scmp.eq.s32.totalorder %s16, 0
    %p93 = por %p91, %p92
    %p94 = scmp.ne.s32.totalorder %s82, %s83
    %p95 = scmp.eq.s32.totalorder %s17, 1
    %p96 = por %p94, %p95
    %p98 = scmp.ne.s32.totalorder %s83, %s97
    %p99 = scmp.eq.s32.totalorder %s17, 0
    %p100 = por %p98, %p99
    %s101 = ssub.s32 %s18, %s30
    %p102 = scmp.eq.s32.totalorder %s101, 0
    %s104 = sadd.s32 %s103, 1
    %s105 = scalar_select %p102, %s103, %s104
    %p108 = pneg %p102
    %p109 = scmp.eq.s32.totalorder %s11, 1
    %p110 = por %p108, %p109
    %p111 = scmp.ne.s32.totalorder %s103, %s106
    %p112 = scmp.eq.s32.totalorder %s11, 0
    %p113 = por %p111, %p112
    %p114 = scmp.ne.s32.totalorder %s103, %s106
    %p115 = scmp.eq.s32.totalorder %s16, 1
    %p116 = por %p114, %p115
    %p117 = scmp.ne.s32.totalorder %s106, %s107
    %p118 = scmp.eq.s32.totalorder %s16, 0
    %p119 = por %p117, %p118
    %p120 = scmp.ne.s32.totalorder %s106, %s107
    %p121 = scmp.eq.s32.totalorder %s17, 1
    %p122 = por %p120, %p121
    %p124 = scmp.ne.s32.totalorder %s107, %s123
    %p125 = scmp.eq.s32.totalorder %s17, 0
    %p126 = por %p124, %p125
    %p127 = scmp.le.s32.totalorder 1, %s11
    %p128 = scmp.lt.s32.totalorder %s11, 3
    %p129 = pnand %p127, %p128
    %p130 = pneg %p129
    // Predicated region
    $region9: #{tpu_custom_call.1} parent=5 // pred_check
      _
    $region10: #{tpu_custom_call.1} parent=5 // pred_check_branch
      %132 = sbr.rel (%p129) target = $region12
    $region11: #{tpu_custom_call.1} parent=5 // pred_region
      %s133 = ssub.s32 %s11, 1
      // Predicated region
      $region13: #{tpu_custom_call.1} parent=11 // pred_check
        %p134 = pneg %p72
      $region14: #{tpu_custom_call.1} parent=11 // pred_check_branch
        %136 = sbr.rel (%p134) target = $region16
      $region15: #{tpu_custom_call.1} parent=11 // pred_region
        _
      $region16: #{tpu_custom_call.1} parent=11 // pred_fallthru
        _
      // Predicated region
      $region17: #{tpu_custom_call.1} parent=11 // pred_check
        %p137 = pneg %p93
      $region18: #{tpu_custom_call.1} parent=11 // pred_check_branch
        %139 = sbr.rel (%p137) target = $region20
      $region19: #{tpu_custom_call.1} parent=11 // pred_region
        _
      $region20: #{tpu_custom_call.1} parent=11 // pred_fallthru
        _
    $region12: #{tpu_custom_call.1} parent=5 // pred_fallthru
      _
    %p140 = scmp.lt.s32.totalorder %s11, 2
    // Predicated region
    $region21: #{tpu_custom_call.1} parent=5 // pred_check
      %p141 = pneg %p140
    $region22: #{tpu_custom_call.1} parent=5 // pred_check_branch
      %143 = sbr.rel (%p141) target = $region24
    $region23: #{tpu_custom_call.1} parent=5 // pred_region
      // Predicated region
      $region25: #{tpu_custom_call.1} parent=23 // pred_check
        %p144 = pneg %p45
      $region26: #{tpu_custom_call.1} parent=23 // pred_check_branch
        %146 = sbr.rel (%p144) target = $region28
      $region27: #{tpu_custom_call.1} parent=23 // pred_region
        %p147 = scmp.lt.s32.totalorder %s18, 1
        %s148 = scalar_select %p147, %s18, 1
        %p149 = scmp.lt.s32.totalorder %s19, 0
        %s150 = scalar_select %p149, %s19, 0
        %s151 = sadd.s32 %s150, %s148
        %s152 = smul.addr %s151, 4
        %s153 = scalar_lea.vmem %s0, %s152
      $region28: #{tpu_custom_call.1} parent=23 // pred_fallthru
        _
    $region24: #{tpu_custom_call.1} parent=5 // pred_fallthru
      _
    %p154 = scmp.le.s32.totalorder 1, %s11
    %p155 = scmp.lt.s32.totalorder %s11, 3
    %p156 = pnand %p154, %p155
    %p157 = pneg %p156
    // Predicated region
    $region29: #{tpu_custom_call.1} parent=5 // pred_check
      _
    $region30: #{tpu_custom_call.1} parent=5 // pred_check_branch
      %159 = sbr.rel (%p156) target = $region32
    $region31: #{tpu_custom_call.1} parent=5 // pred_region
      %s160 = ssub.s32 %s11, 1
      %p161 = scmp.lt.s32.totalorder %s20, 1
      %s162 = scalar_select %p161, %s20, 1
      %p163 = scmp.lt.s32.totalorder %s21, 0
      %s164 = scalar_select %p163, %s21, 0
      %s165 = sadd.s32 %s164, %s162
      %s166 = smul.addr %s165, 4
      %s167 = scalar_lea.vmem %s0, %s166
      %p168 = pneg %p51
      %p169 = pneg %p48
      %p170 = pneg %p72
      %p171 = pneg %p69
      %p172 = pneg %p93
      %p173 = pneg %p90
      %p174 = pneg %p119
      %p175 = pneg %p116
      %p176 = scmp.lt.s32.totalorder %s20, 1
      %s177 = scalar_select %p176, %s20, 1
      %s178 = scalar_lea.vmem %s3, %s177
      %p179 = scmp.lt.s32.totalorder %s20, 1
      %s180 = scalar_select %p179, %s20, 1
      %p181 = scmp.lt.s32.totalorder %s21, 0
      %s182 = scalar_select %p181, %s21, 0
      %s183 = sadd.s32 %s182, %s180
      %s184 = smul.addr %s183, 4
      %s185 = scalar_lea.vmem %s0, %s184
      %p186 = scmp.lt.s32.totalorder %s20, 1
      %s187 = scalar_select %p186, %s20, 1
      %s188 = scalar_lea.vmem %s3, %s187
      %p189 = scmp.eq.s32.totalorder %s21, 0
      // Predicated region
      $region33: #{tpu_custom_call.1} parent=31 // pred_check
        %p190 = pneg %p189
      $region34: #{tpu_custom_call.1} parent=31 // pred_check_branch
        %192 = sbr.rel (%p190) target = $region36
      $region35: #{tpu_custom_call.1} parent=31 // pred_region
        %vm193 = vcmask 253952
        %194 = vst.msk [vmem:[#allocation2] sm:$0x1] %vm193, 0.0
      $region36: #{tpu_custom_call.1} parent=31 // pred_fallthru
        _
      %v195 = vld [vmem:[#allocation2] sm:$0x1]
      %v196 = vld [vmem:[%s185] sm:$0xf]
      %vm197 = vcmask 257024
      %v198 = vsel %vm197, %v196, 0.0
      %v199 = vrot.slane %v198, 4
      %v200 = vadd.f32 %v198, %v199
      %v201 = vrot.slane %v200, 2
      %v202 = vadd.f32 %v200, %v201
      %v203 = vrot.slane %v202, 1
      %v204 = vadd.f32 %v202, %v203
      %v205 = vadd.f32 %v195, %v204
      %vm206 = vcmask 253952
      %207 = vst.msk [vmem:[#allocation2] sm:$0x1] %vm206, %v205
      // Predicated region
      $region37: #{tpu_custom_call.1} parent=31 // pred_check
        %p208 = pneg %p189
      $region38: #{tpu_custom_call.1} parent=31 // pred_check_branch
        %210 = sbr.rel (%p208) target = $region40
      $region39: #{tpu_custom_call.1} parent=31 // pred_region
        %v211 = vld [vmem:[#allocation2] sm:$0x1]
        %v212 = vmul.f32 %v211, 0.25
        %v213 = vld [vmem:[%s1] sm:$0xff]
        %v214 = vld [vmem:[%s1 + $0x8] sm:$0xff]
        %v215 = vld [vmem:[%s1 + $0x10] sm:$0xff]
        %v216 = vld [vmem:[%s1 + $0x18] sm:$0xff]
        %v217 = vld [vmem:[#allocation3] sm:$0x1]
        %vm218 = vcmask 261120
        %v220 = vsel %vm218, %v212, 0
        %222 = vmatprep.subr.mxu0 0.0
        %223 = vmatpush1.msra.mxu0 %v213
        %224 = vmatprep.subr.mxu0 0.0
        %225 = vmatpush1.msra.mxu0 %v214
        %226 = vmatprep.subr.mxu0 0.0
        %227 = vmatpush1.msra.mxu0 %v215
        %228 = vmatprep.subr.mxu0 0.0
        %229 = vmatpush1.msra.mxu0 %v216
        %230 = vmatprep.subr.mxu0 0.0
        %231 = vmatpush1.msra.mxu0 0.0
        %232 = vmatprep.subr.mxu0 0.0
        %233 = vmatpush1.msra.mxu0 0.0
        %234 = vmatprep.subr.mxu0 0.0
        %235 = vmatpush1.msra.mxu0 0.0
        %236 = vmatprep.subr.mxu0 0.0
        %237 = vmatpush1.msra.mxu0 0.0
        %238 = vmatprep.subr.mxu0 0.0
        %239 = vmatpush1.msra.mxu0 0.0
        %240 = vmatprep.subr.mxu0 0.0
        %241 = vmatpush1.msra.mxu0 0.0
        %242 = vmatprep.subr.mxu0 0.0
        %243 = vmatpush1.msra.mxu0 0.0
        %244 = vmatprep.subr.mxu0 0.0
        %245 = vmatpush1.msra.mxu0 0.0
        %246 = vmatprep.subr.mxu0 0.0
        %247 = vmatpush1.msra.mxu0 0.0
        %248 = vmatprep.subr.mxu0 0.0
        %249 = vmatpush1.msra.mxu0 0.0
        %250 = vmatprep.subr.mxu0 0.0
        %251 = vmatpush1.msra.mxu0 0.0
        %252 = vmatprep.subr.mxu0 0.0
        %253 = vmatpush1.msra.mxu0 0.0
        %254 = vmatprep.subr.mxu0 0.0
        %255 = vmatpush1.msra.mxu0 0.0
        %256 = vmatprep.subr.mxu0 0.0
        %257 = vmatpush1.msra.mxu0 0.0
        %258 = vmatprep.subr.mxu0 0.0
        %259 = vmatpush1.msra.mxu0 0.0
        %260 = vmatprep.subr.mxu0 0.0
        %261 = vmatpush1.msra.mxu0 0.0
        %262 = vmatprep.subr.mxu0 0.0
        %263 = vmatpush1.msra.mxu0 0.0
        %264 = vmatprep.subr.mxu0 0.0
        %265 = vmatpush1.msra.mxu0 0.0
        %266 = vmatprep.subr.mxu0 0.0
        %267 = vmatpush1.msra.mxu0 0.0
        %268 = vmatprep.subr.mxu0 0.0
        %269 = vmatpush1.msra.mxu0 0.0
        %270 = vmatprep.subr.mxu0 0.0
        %271 = vmatpush1.msra.mxu0 0.0
        %272 = vmatprep.subr.mxu0 0.0
        %273 = vmatpush1.msra.mxu0 0.0
        %274 = vmatprep.subr.mxu0 0.0
        %275 = vmatpush1.msra.mxu0 0.0
        %276 = vmatprep.subr.mxu0 0.0
        %277 = vmatpush1.msra.mxu0 0.0
        %278 = vmatprep.subr.mxu0 0.0
        %279 = vmatpush1.msra.mxu0 0.0
        %280 = vmatprep.subr.mxu0 0.0
        %281 = vmatpush1.msra.mxu0 0.0
        %282 = vmatprep.subr.mxu0 0.0
        %283 = vmatpush1.msra.mxu0 0.0
        %284 = vmatprep.subr.mxu0 0.0
        %285 = vmatpush1.msra.mxu0 0.0
        %286 = vmatprep.mubr.f32.mxu0 0.0
        %287 = vmatmul.mubr.f32.gmra.mrb[0].mxu0 %v220
        %v288 = vpop.f32.mrb[0].mxu0
        %v289 = vadd.f32 %v217, %v288
        %v290 = vpop.f32.mrb[0].mxu0
        %291 = vdwg.mxu0
        %vm292 = vcmask 0
        %293 = vst.msk [vmem:[%s188] sm:$0x1] %vm292, %v289
      $region40: #{tpu_custom_call.1} parent=31 // pred_fallthru
        _
      %p294 = scmp.lt.s32.totalorder %s20, 1
      %s295 = scalar_select %p294, %s20, 1
      %s296 = scalar_lea.vmem %s3, %s295
      // Predicated region
      $region41: #{tpu_custom_call.1} parent=31 // pred_check
        %p297 = pneg %p116
      $region42: #{tpu_custom_call.1} parent=31 // pred_check_branch
        %299 = sbr.rel (%p297) target = $region44
      $region43: #{tpu_custom_call.1} parent=31 // pred_region
        _
      $region44: #{tpu_custom_call.1} parent=31 // pred_fallthru
        _
    $region32: #{tpu_custom_call.1} parent=5 // pred_fallthru
      _
    %p300 = scmp.le.s32.totalorder 2, %s11
    // Predicated region
    $region45: #{tpu_custom_call.1} parent=5 // pred_check
      %p301 = pneg %p300
    $region46: #{tpu_custom_call.1} parent=5 // pred_check_branch
      %303 = sbr.rel (%p301) target = $region48
    $region47: #{tpu_custom_call.1} parent=5 // pred_region
      %s304 = ssub.s32 %s11, 2
      // Predicated region
      $region49: #{tpu_custom_call.1} parent=47 // pred_check
        %p305 = pneg %p122
      $region50: #{tpu_custom_call.1} parent=47 // pred_check_branch
        %307 = sbr.rel (%p305) target = $region52
      $region51: #{tpu_custom_call.1} parent=47 // pred_region
        %p308 = scmp.lt.s32.totalorder %s22, 1
        %s309 = scalar_select %p308, %s22, 1
        %s310 = scalar_lea.vmem %s3, %s309
      $region52: #{tpu_custom_call.1} parent=47 // pred_fallthru
        _
    $region48: #{tpu_custom_call.1} parent=5 // pred_fallthru
      _
  $region6: #{tpu_custom_call.1} parent=0 // loop_footer
    %s15 = sadd.s32 1, %s11
  $region7: #{tpu_custom_call.1} parent=0 // loop_footer_branch
    %10 = sbr.rel target = $region3
  $region8: #{tpu_custom_call.1} parent=0 // loop_exit
    _

</llo_original>
